<compile_context>
chip_gen: v7x
topology: tpu7x:2x2x1
jax: 0.10.0
libtpu: 0.0.40
codegen_flags: <defaults>
</compile_context>

<pallas_src>
import math

import jax
import jax.numpy as jnp
from jax.experimental import pallas as pl
from jax.experimental.pallas import tpu as pltpu

N_CORES = 2           # leading "parallel" axis; exploits both TCs on v7x
MAX_TILE_ROWS = 2048  # 2048 x 128 f32 = 1 MiB per tile (2 inputs x 2 bufs = 4 MiB)


def _round_up(x, m):
    return ((x + m - 1) // m) * m


def _make_map_loss_kernel(n_pred, n_params, n_steps, tile_rows, n_cores):
    """Build the kernel with static element counts baked in."""
    log_2pi = math.log(2.0 * math.pi)
    inv_n_pred = 1.0 / float(n_pred)
    inv_n_params = 1.0 / float(n_params)
    # The prior mean is spread evenly over every element of every core's output
    # slab, so that sum(all output elements) == mse - prior_mean.
    prior_spread = 1.0 / float(n_cores * 8 * 128)

    def kernel(pred_ref, lab_ref, param_ref, out_ref, acc_ref):
        i = pl.program_id(1)

        @pl.when(i == 0)
        def _init():
            acc_ref[...] = jnp.zeros_like(acc_ref)

        # --- likelihood partials: sum of squared diffs for this tile --------
        diff = pred_ref[...].astype(jnp.float32) - lab_ref[...].astype(jnp.float32)
        sq = diff * diff
        # Fold (tile_rows, 128) -> (8, 128) via a leading-axis sum.  The
        # reshape is (8,128)-tile aligned (no data movement) and the reduce is
        # pure VPU adds; the lane/sublane reduction happens once, outside the
        # kernel, on the tiny (n_cores*8, 128) partial slab.
        acc_ref[...] += jnp.sum(sq.reshape(tile_rows // 8, 8, 128), axis=0)

        @pl.when(i == n_steps - 1)
        def _finalize():
            # --- prior term: mean log N(theta; 0, 1) -------------------------
            # Padded parameter entries are exactly zero, so sum(p*p) over the
            # padded slab equals the true sum; the constant term uses the true
            # n_params instead of masking.
            p = param_ref[...].astype(jnp.float32)
            prior_sum = -0.5 * jnp.sum(p * p) - 0.5 * log_2pi * n_params
            prior_mean = prior_sum * inv_n_params
            out_ref[...] = acc_ref[...] * inv_n_pred - prior_mean * prior_spread

    return kernel


@jax.jit
def map_loss_swag(predictions, labels, param_vector):
    """predictions/labels: any shape (e.g. NCHW); param_vector: 1-D."""
    assert predictions.size == labels.size
    n_pred = predictions.size
    n_params = param_vector.size

    # --- tiling of the prediction/label stream (all counts are static) ------
    rows_needed = pl.cdiv(n_pred, 128)
    rows_per_core = _round_up(max(pl.cdiv(rows_needed, N_CORES), 1), 8)
    tile_rows = min(MAX_TILE_ROWS, rows_per_core)
    rows_per_core = _round_up(rows_per_core, tile_rows)
    n_steps = rows_per_core // tile_rows
    rows_total = N_CORES * rows_per_core

    def to_slab(x):
        # Flatten row-major (same order as torch .view(-1)); zero-pad so any
        # element count works (pads contribute 0 to the squared-diff sum).
        flat = x.reshape(-1)
        pad = rows_total * 128 - n_pred
        if pad:
            flat = jnp.pad(flat, (0, pad))
        return flat.reshape(rows_total, 128)

    pred2d = to_slab(predictions)
    lab2d = to_slab(labels)

    # --- parameter vector: zero-pad to an (8, 128)-aligned resident slab ----
    p_rows = _round_up(max(pl.cdiv(n_params, 128), 1), 8)
    p_pad = p_rows * 128 - n_params
    p_flat = param_vector.reshape(-1)
    if p_pad:
        p_flat = jnp.pad(p_flat, (0, p_pad))
    params2d = p_flat.reshape(p_rows, 128)

    kernel = _make_map_loss_kernel(n_pred, n_params, n_steps, tile_rows, N_CORES)

    partials = pl.pallas_call(
        kernel,
        out_shape=jax.ShapeDtypeStruct((N_CORES * 8, 128), jnp.float32),
        grid_spec=pltpu.PrefetchScalarGridSpec(
            num_scalar_prefetch=0,
            grid=(N_CORES, n_steps),
            in_specs=[
                pl.BlockSpec((tile_rows, 128), lambda c, i: (c * n_steps + i, 0)),
                pl.BlockSpec((tile_rows, 128), lambda c, i: (c * n_steps + i, 0)),
                # Small parameter slab: constant block index -> resident,
                # DMA'd once per core, not once per step.
                pl.BlockSpec((p_rows, 128), lambda c, i: (0, 0)),
            ],
            out_specs=pl.BlockSpec((8, 128), lambda c, i: (c, 0)),
            scratch_shapes=[pltpu.VMEM((8, 128), jnp.float32)],
        ),
        compiler_params=pltpu.CompilerParams(
            dimension_semantics=("parallel", "arbitrary")),
    )(pred2d, lab2d, params2d)

    # Tiny final reduction of the per-core partial-loss slabs.
    return jnp.sum(partials)


def reference_map_loss(predictions, labels, param_vector):
    mse = jnp.mean((predictions - labels).astype(jnp.float32) ** 2)
    logp = -0.5 * param_vector.astype(jnp.float32) ** 2 - 0.5 * math.log(2.0 * math.pi)
    return mse - jnp.mean(logp)


if __name__ == "__main__":
    key = jax.random.PRNGKey(0)
    k_pred, k_lab, k_w, k_b, k_p2, k_l2 = jax.random.split(key, 6)

    # Small NCHW tensors: batch=2, channels=4, spatial=16x16.
    predictions = jax.random.normal(k_pred, (2, 4, 16, 16), jnp.float32)
    labels = jax.random.normal(k_lab, (2, 4, 16, 16), jnp.float32)

    # Synthetic "model": one linear layer (weight [32, 16], bias [32]).
    # parameters_to_vector order: weight (row-major) then bias.
    weight = 0.1 * jax.random.normal(k_w, (32, 16), jnp.float32)
    bias = 0.1 * jax.random.normal(k_b, (32,), jnp.float32)
    param_vector = jnp.concatenate([weight.reshape(-1), bias.reshape(-1)])

    loss = map_loss_swag(predictions, labels, param_vector)
    jax.block_until_ready(loss)
    ref = reference_map_loss(predictions, labels, param_vector)
    assert jnp.allclose(loss, ref, rtol=1e-5, atol=1e-5), (loss, ref)

    # Element count not a multiple of 128 (exercises the zero-padding path).
    pred_odd = jax.random.normal(k_p2, (2, 3, 5, 7), jnp.float32)
    lab_odd = jax.random.normal(k_l2, (2, 3, 5, 7), jnp.float32)
    loss_odd = map_loss_swag(pred_odd, lab_odd, param_vector)
    jax.block_until_ready(loss_odd)
    ref_odd = reference_map_loss(pred_odd, lab_odd, param_vector)
    assert jnp.allclose(loss_odd, ref_odd, rtol=1e-5, atol=1e-5), (loss_odd, ref_odd)

    print("KERNEL_OK")
</pallas_src>

<mosaic_0001>
module attributes {stable_mosaic.version = 11 : i64} {
  func.func @kernel(%arg0: i32, %arg1: i32, %arg2: memref<8x128xf32, #tpu.memory_space<vmem>>, %arg3: memref<8x128xf32, #tpu.memory_space<vmem>>, %arg4: memref<8x128xf32, #tpu.memory_space<vmem>>, %arg5: memref<8x128xf32, #tpu.memory_space<vmem>>, %arg6: memref<8x128xf32, #tpu.memory_space<vmem>>) attributes {dimension_semantics = [#tpu.dimension_semantics<parallel>, #tpu.dimension_semantics<arbitrary>], iteration_bounds = array<i64: 2, 1>, scalar_prefetch = 0 : i64, scratch_operands = 1 : i64, tpu.core_type = #tpu.core_type<tc>, window_params = [{transform_indices = @transform_0, window_bounds = array<i64: 8, 128>}, {transform_indices = @transform_1, window_bounds = array<i64: 8, 128>}, {pipeline_mode = #tpu.pipeline_mode<synchronous>, transform_indices = @transform_2, window_bounds = array<i64: 8, 128>}, {transform_indices = @transform_3, window_bounds = array<i64: 8, 128>}]} {
    %c0_i32 = arith.constant 0 : i32
    %0 = arith.cmpi eq, %arg1, %c0_i32 : i32
    %1 = arith.extui %0 : i1 to i32
    %c0_i32_0 = arith.constant 0 : i32
    %2 = arith.cmpi ne, %1, %c0_i32_0 : i32
    scf.if %2 {
      %cst_10 = arith.constant 0.000000e+00 : f32
      %15 = vector.broadcast %cst_10 : f32 to vector<8x128xf32>
      %c0_11 = arith.constant 0 : index
      %c0_12 = arith.constant 0 : index
      %16 = vector.load %arg6[%c0_11, %c0_12] : memref<8x128xf32, #tpu.memory_space<vmem>>, vector<8x128xf32>
      tpu.vector_store %arg6[%c0_11, %c0_12], %15 {strides = array<i32>} : memref<8x128xf32, #tpu.memory_space<vmem>>, vector<8x128xf32>,
    } else {
    }
    %c0 = arith.constant 0 : index
    %c0_1 = arith.constant 0 : index
    %3 = vector.load %arg2[%c0, %c0_1] : memref<8x128xf32, #tpu.memory_space<vmem>>, vector<8x128xf32>
    %c0_2 = arith.constant 0 : index
    %c0_3 = arith.constant 0 : index
    %4 = vector.load %arg3[%c0_2, %c0_3] : memref<8x128xf32, #tpu.memory_space<vmem>>, vector<8x128xf32>
    %5 = arith.subf %3, %4 : vector<8x128xf32>
    %6 = arith.mulf %5, %5 : vector<8x128xf32>
    %c0_4 = arith.constant 0 : index
    %c0_5 = arith.constant 0 : index
    %7 = vector.load %arg6[%c0_4, %c0_5] : memref<8x128xf32, #tpu.memory_space<vmem>>, vector<8x128xf32>
    %8 = vector.shape_cast %6 : vector<8x128xf32> to vector<1x8x128xf32>
    %cst = arith.constant dense<0.000000e+00> : vector<8x128xf32>
    %9 = vector.multi_reduction <add>, %8, %cst [0] : vector<1x8x128xf32> to vector<8x128xf32>
    %10 = arith.addf %7, %9 : vector<8x128xf32>
    %c0_6 = arith.constant 0 : index
    %c0_7 = arith.constant 0 : index
    %11 = vector.load %arg6[%c0_6, %c0_7] : memref<8x128xf32, #tpu.memory_space<vmem>>, vector<8x128xf32>
    tpu.vector_store %arg6[%c0_6, %c0_7], %10 {strides = array<i32>} : memref<8x128xf32, #tpu.memory_space<vmem>>, vector<8x128xf32>,
    %c0_i32_8 = arith.constant 0 : i32
    %12 = arith.cmpi eq, %arg1, %c0_i32_8 : i32
    %13 = arith.extui %12 : i1 to i32
    %c0_i32_9 = arith.constant 0 : i32
    %14 = arith.cmpi ne, %13, %c0_i32_9 : i32
    scf.if %14 {
      %c0_10 = arith.constant 0 : index
      %c0_11 = arith.constant 0 : index
      %15 = vector.load %arg4[%c0_10, %c0_11] : memref<8x128xf32, #tpu.memory_space<vmem>>, vector<8x128xf32>
      %16 = arith.mulf %15, %15 : vector<8x128xf32>
      %17 = vector.shape_cast %16 : vector<8x128xf32> to vector<1x8x128xf32>
      %cst_12 = arith.constant dense<0.000000e+00> : vector<1xf32>
      %18 = vector.multi_reduction <add>, %17, %cst_12 [1, 2] : vector<1x8x128xf32> to vector<1xf32>
      %19 = vector.shape_cast %18 : vector<1xf32> to vector<1x1x1xf32>
      %20 = vector.extract %19[0, 0, 0] : f32 from vector<1x1x1xf32>
      %cst_13 = arith.constant -5.000000e-01 : f32
      %21 = arith.mulf %cst_13, %20 : f32
      %cst_14 = arith.constant 499.902557 : f32
      %22 = arith.subf %21, %cst_14 : f32
      %cst_15 = arith.constant 0.0018382353 : f32
      %23 = arith.mulf %22, %cst_15 : f32
      %c0_16 = arith.constant 0 : index
      %c0_17 = arith.constant 0 : index
      %24 = vector.load %arg6[%c0_16, %c0_17] : memref<8x128xf32, #tpu.memory_space<vmem>>, vector<8x128xf32>
      %cst_18 = arith.constant 4.8828125E-4 : f32
      %25 = vector.broadcast %cst_18 : f32 to vector<8x128xf32>
      %26 = arith.mulf %24, %25 : vector<8x128xf32>
      %cst_19 = arith.constant 4.8828125E-4 : f32
      %27 = arith.mulf %23, %cst_19 : f32
      %28 = vector.broadcast %27 : f32 to vector<8x128xf32>
      %29 = arith.subf %26, %28 : vector<8x128xf32>
      %c0_20 = arith.constant 0 : index
      %c0_21 = arith.constant 0 : index
      %30 = vector.load %arg5[%c0_20, %c0_21] : memref<8x128xf32, #tpu.memory_space<vmem>>, vector<8x128xf32>
      tpu.vector_store %arg5[%c0_20, %c0_21], %29 {strides = array<i32>} : memref<8x128xf32, #tpu.memory_space<vmem>>, vector<8x128xf32>,
    } else {
    }
    return
  }
  func.func @transform_0(%arg0: i32, %arg1: i32) -> (i32, i32) {
    %c1_i32 = arith.constant 1 : i32
    %0 = arith.muli %arg0, %c1_i32 : i32
    %1 = arith.addi %0, %arg1 : i32
    %c0_i32 = arith.constant 0 : i32
    %c0_i32_0 = arith.constant 0 : i32
    return %1, %c0_i32 : i32, i32
  }
  func.func @transform_1(%arg0: i32, %arg1: i32) -> (i32, i32) {
    %c1_i32 = arith.constant 1 : i32
    %0 = arith.muli %arg0, %c1_i32 : i32
    %1 = arith.addi %0, %arg1 : i32
    %c0_i32 = arith.constant 0 : i32
    %c0_i32_0 = arith.constant 0 : i32
    return %1, %c0_i32 : i32, i32
  }
  func.func @transform_2(%arg0: i32, %arg1: i32) -> (i32, i32) {
    %c0_i32 = arith.constant 0 : i32
    %c0_i32_0 = arith.constant 0 : i32
    %c0_i32_1 = arith.constant 0 : i32
    return %c0_i32, %c0_i32_0 : i32, i32
  }
  func.func @transform_3(%arg0: i32, %arg1: i32) -> (i32, i32) {
    %c0_i32 = arith.constant 0 : i32
    %c0_i32_0 = arith.constant 0 : i32
    return %arg0, %c0_i32 : i32, i32
  }
}

</mosaic_0001>

<llo_original>
// kernel: map_loss_swag.1
$region0: #{map_loss_swag.1}
  #allocation0 [shape = 'u32[]', space=smem, size = 0x4, offset = 0x4, fixed_abs, tag = 'smem constant byte address 0x4 - core index']
  #allocation1 [shape = 'u32[144,128]{1,0:T(1,128)}', space=vmem, size = 0x12000, scoped, tag = 'internal scratch']
  #allocation2 [shape = 'f32[8,128]{1,0:T(8,128)}', space=vmem, size = 0x1000, scoped, tag = 'scratch operand']
  %s0 = inlined_call_operand.vmem [shape: f32[16,128], index: 0, kind: input, shape index: {}]
  %s1 = inlined_call_operand.vmem [shape: f32[16,128], index: 1, kind: input, shape index: {}]
  %s2 = inlined_call_operand.vmem [shape: f32[8,128], index: 2, kind: input, shape index: {}]
  %s3 = inlined_call_operand.vmem [shape: f32[16,128], index: 3, kind: output, shape index: {}]
  %s4 = sld [smem:[#allocation0]]
  $region53: #{map_loss_swag.1} parent=0
    _
  %s6 = ssub.s32 1, %s4
  %s7 = scalar_select 0, %s6, %s4
  loop: start=0, step=1, limit=4
  $region2: #{map_loss_swag.1} parent=0 // loop_pre_header
    _
  $region3: #{map_loss_swag.1} parent=0 // loop_header
    %s9 = sphi 0, %s13
    %p10 = scmp.ge.s32.totalorder %s9, 4
    %s16 = sphi 0, %s28
    %s17 = sphi 0, %s24
    %s18 = sphi 0, %s16
    %s19 = sphi 0, %s17
    %s20 = sphi 0, %s18
    %s21 = sphi 0, %s19
    %s33 = sphi 0, %s35
    %s36 = sphi 0, %s33
    %s37 = sphi 0, %s36
    %s53 = sphi 0, %s37
    %s61 = sphi 0, %s63
    %s64 = sphi 0, %s61
    %s65 = sphi 0, %s64
    %s81 = sphi 0, %s65
    %s85 = sphi 0, %s85
    %s87 = sphi 0, %s85
    %s88 = sphi 0, %s87
    %s102 = sphi 0, %s88
    %s108 = sphi 0, %s110
    %s111 = sphi 0, %s108
    %s112 = sphi 0, %s111
    %s128 = sphi 0, %s112
  $region4: #{map_loss_swag.1} parent=0 // loop_header_branch
    %12 = sbr.rel (%p10) target = $region8
  $region5: #{map_loss_swag.1} parent=0 // loop_body
    %s14 = ssub.s32 %s9, 1
    %s15 = ssub.s32 %s9, 2
    %s22 = sadd.s32 1, %s17
    %p23 = scmp.ge.s32.totalorder %s22, 1
    %s24 = scalar_select %p23, 0, %s22
    %s25 = sadd.s32 1, %s16
    %s26 = scalar_select %p23, %s25, %s16
    %p27 = scmp.ge.s32.totalorder %s26, 2
    %s28 = scalar_select %p27, 0, %s26
    %s29 = sadd.s32 %s16, %s17
    %s30 = sadd.s32 %s28, %s24
    %s31 = ssub.s32 %s29, %s30
    %p32 = scmp.eq.s32.totalorder %s31, 0
    %s34 = sadd.s32 %s33, 1
    %s35 = scalar_select %p32, %s33, %s34
    %p38 = pneg %p32
    %p39 = scmp.eq.s32.totalorder %s9, 1
    %p40 = por %p38, %p39
    %p41 = scmp.ne.s32.totalorder %s33, %s36
    %p42 = scmp.eq.s32.totalorder %s9, 0
    %p43 = por %p41, %p42
    %p44 = scmp.ne.s32.totalorder %s33, %s36
    %p45 = scmp.eq.s32.totalorder %s14, 1
    %p46 = por %p44, %p45
    %p47 = scmp.ne.s32.totalorder %s36, %s37
    %p48 = scmp.eq.s32.totalorder %s14, 0
    %p49 = por %p47, %p48
    %p50 = scmp.ne.s32.totalorder %s36, %s37
    %p51 = scmp.eq.s32.totalorder %s15, 1
    %p52 = por %p50, %p51
    %p54 = scmp.ne.s32.totalorder %s37, %s53
    %p55 = scmp.eq.s32.totalorder %s15, 0
    %p56 = por %p54, %p55
    %s57 = sadd.s32 %s16, %s17
    %s58 = sadd.s32 %s28, %s24
    %s59 = ssub.s32 %s57, %s58
    %p60 = scmp.eq.s32.totalorder %s59, 0
    %s62 = sadd.s32 %s61, 1
    %s63 = scalar_select %p60, %s61, %s62
    %p66 = pneg %p60
    %p67 = scmp.eq.s32.totalorder %s9, 1
    %p68 = por %p66, %p67
    %p69 = scmp.ne.s32.totalorder %s61, %s64
    %p70 = scmp.eq.s32.totalorder %s9, 0
    %p71 = por %p69, %p70
    %p72 = scmp.ne.s32.totalorder %s61, %s64
    %p73 = scmp.eq.s32.totalorder %s14, 1
    %p74 = por %p72, %p73
    %p75 = scmp.ne.s32.totalorder %s64, %s65
    %p76 = scmp.eq.s32.totalorder %s14, 0
    %p77 = por %p75, %p76
    %p78 = scmp.ne.s32.totalorder %s64, %s65
    %p79 = scmp.eq.s32.totalorder %s15, 1
    %p80 = por %p78, %p79
    %p82 = scmp.ne.s32.totalorder %s65, %s81
    %p83 = scmp.eq.s32.totalorder %s15, 0
    %p84 = por %p82, %p83
    %s86 = sadd.s32 %s85, 1
    %p89 = scmp.eq.s32.totalorder %s9, 1
    %p90 = scmp.ne.s32.totalorder %s85, %s87
    %p91 = scmp.eq.s32.totalorder %s9, 0
    %p92 = por %p90, %p91
    %p93 = scmp.ne.s32.totalorder %s85, %s87
    %p94 = scmp.eq.s32.totalorder %s14, 1
    %p95 = por %p93, %p94
    %p96 = scmp.ne.s32.totalorder %s87, %s88
    %p97 = scmp.eq.s32.totalorder %s14, 0
    %p98 = por %p96, %p97
    %p99 = scmp.ne.s32.totalorder %s87, %s88
    %p100 = scmp.eq.s32.totalorder %s15, 1
    %p101 = por %p99, %p100
    %p103 = scmp.ne.s32.totalorder %s88, %s102
    %p104 = scmp.eq.s32.totalorder %s15, 0
    %p105 = por %p103, %p104
    %s106 = ssub.s32 %s16, %s28
    %p107 = scmp.eq.s32.totalorder %s106, 0
    %s109 = sadd.s32 %s108, 1
    %s110 = scalar_select %p107, %s108, %s109
    %p113 = pneg %p107
    %p114 = scmp.eq.s32.totalorder %s9, 1
    %p115 = por %p113, %p114
    %p116 = scmp.ne.s32.totalorder %s108, %s111
    %p117 = scmp.eq.s32.totalorder %s9, 0
    %p118 = por %p116, %p117
    %p119 = scmp.ne.s32.totalorder %s108, %s111
    %p120 = scmp.eq.s32.totalorder %s14, 1
    %p121 = por %p119, %p120
    %p122 = scmp.ne.s32.totalorder %s111, %s112
    %p123 = scmp.eq.s32.totalorder %s14, 0
    %p124 = por %p122, %p123
    %p125 = scmp.ne.s32.totalorder %s111, %s112
    %p126 = scmp.eq.s32.totalorder %s15, 1
    %p127 = por %p125, %p126
    %p129 = scmp.ne.s32.totalorder %s112, %s128
    %p130 = scmp.eq.s32.totalorder %s15, 0
    %p131 = por %p129, %p130
    %p132 = scmp.le.s32.totalorder 1, %s9
    %p133 = scmp.lt.s32.totalorder %s9, 3
    %p134 = pnand %p132, %p133
    %p135 = pneg %p134
    // Predicated region
    $region9: #{map_loss_swag.1} parent=5 // pred_check
      _
    $region10: #{map_loss_swag.1} parent=5 // pred_check_branch
      %137 = sbr.rel (%p134) target = $region12
    $region11: #{map_loss_swag.1} parent=5 // pred_region
      %s138 = ssub.s32 %s9, 1
      // Predicated region
      $region13: #{map_loss_swag.1} parent=11 // pred_check
        %p139 = pneg %p98
      $region14: #{map_loss_swag.1} parent=11 // pred_check_branch
        %141 = sbr.rel (%p139) target = $region16
      $region15: #{map_loss_swag.1} parent=11 // pred_region
        _
      $region16: #{map_loss_swag.1} parent=11 // pred_fallthru
        _
    $region12: #{map_loss_swag.1} parent=5 // pred_fallthru
      _
    %p142 = scmp.lt.s32.totalorder %s9, 2
    // Predicated region
    $region17: #{map_loss_swag.1} parent=5 // pred_check
      %p143 = pneg %p142
    $region18: #{map_loss_swag.1} parent=5 // pred_check_branch
      %145 = sbr.rel (%p143) target = $region20
    $region19: #{map_loss_swag.1} parent=5 // pred_region
      // Predicated region
      $region21: #{map_loss_swag.1} parent=19 // pred_check
        %p146 = pneg %p43
      $region22: #{map_loss_swag.1} parent=19 // pred_check_branch
        %148 = sbr.rel (%p146) target = $region24
      $region23: #{map_loss_swag.1} parent=19 // pred_region
        %s149 = sadd.s32 %s16, %s17
        %p150 = scmp.lt.s32.totalorder %s149, 1
        %s151 = scalar_select %p150, %s149, 1
        %s152 = smul.addr %s151, 8
        %s153 = scalar_lea.vmem %s0, %s152
        %s154 = sadd.s32 %s16, %s17
      $region24: #{map_loss_swag.1} parent=19 // pred_fallthru
        _
      // Predicated region
      $region25: #{map_loss_swag.1} parent=19 // pred_check
        %p155 = pneg %p71
      $region26: #{map_loss_swag.1} parent=19 // pred_check_branch
        %157 = sbr.rel (%p155) target = $region28
      $region27: #{map_loss_swag.1} parent=19 // pred_region
        %s158 = sadd.s32 %s16, %s17
        %p159 = scmp.lt.s32.totalorder %s158, 1
        %s160 = scalar_select %p159, %s158, 1
        %s161 = smul.addr %s160, 8
        %s162 = scalar_lea.vmem %s1, %s161
        %s163 = sadd.s32 %s16, %s17
      $region28: #{map_loss_swag.1} parent=19 // pred_fallthru
        _
    $region20: #{map_loss_swag.1} parent=5 // pred_fallthru
      _
    %p164 = scmp.le.s32.totalorder 1, %s9
    %p165 = scmp.lt.s32.totalorder %s9, 3
    %p166 = pnand %p164, %p165
    %p167 = pneg %p166
    // Predicated region
    $region29: #{map_loss_swag.1} parent=5 // pred_check
      _
    $region30: #{map_loss_swag.1} parent=5 // pred_check_branch
      %169 = sbr.rel (%p166) target = $region32
    $region31: #{map_loss_swag.1} parent=5 // pred_region
      %s170 = ssub.s32 %s9, 1
      %s171 = sadd.s32 %s18, %s19
      %p172 = scmp.lt.s32.totalorder %s171, 1
      %s173 = scalar_select %p172, %s171, 1
      %s174 = smul.addr %s173, 8
      %s175 = scalar_lea.vmem %s0, %s174
      %p176 = pneg %p49
      %p177 = pneg %p46
      %s178 = sadd.s32 %s18, %s19
      %p179 = scmp.lt.s32.totalorder %s178, 1
      %s180 = scalar_select %p179, %s178, 1
      %s181 = smul.addr %s180, 8
      %s182 = scalar_lea.vmem %s1, %s181
      %p183 = pneg %p77
      %p184 = pneg %p74
      %p185 = pneg %p98
      %p186 = pneg %p95
      %p187 = pneg %p124
      %p188 = pneg %p121
      %p189 = scmp.lt.s32.totalorder %s18, 1
      %s190 = scalar_select %p189, %s18, 1
      %s191 = smul.addr %s190, 8
      %s192 = scalar_lea.vmem %s3, %s191
      %s193 = sadd.s32 %s18, %s19
      %p194 = scmp.lt.s32.totalorder %s193, 1
      %s195 = scalar_select %p194, %s193, 1
      %s196 = smul.addr %s195, 8
      %s197 = scalar_lea.vmem %s0, %s196
      %s198 = sadd.s32 %s18, %s19
      %s199 = sadd.s32 %s18, %s19
      %p200 = scmp.lt.s32.totalorder %s199, 1
      %s201 = scalar_select %p200, %s199, 1
      %s202 = smul.addr %s201, 8
      %s203 = scalar_lea.vmem %s1, %s202
      %s204 = sadd.s32 %s18, %s19
      %p205 = scmp.lt.s32.totalorder %s18, 1
      %s206 = scalar_select %p205, %s18, 1
      %s207 = smul.addr %s206, 8
      %s208 = scalar_lea.vmem %s3, %s207
      %p209 = scmp.eq.s32.totalorder %s19, 0
      // Predicated region
      $region33: #{map_loss_swag.1} parent=31 // pred_check
        %p210 = pneg %p209
      $region34: #{map_loss_swag.1} parent=31 // pred_check_branch
        %212 = sbr.rel (%p210) target = $region36
      $region35: #{map_loss_swag.1} parent=31 // pred_region
        %213 = vst [vmem:[#allocation2] sm:$0xff] 0.0
      $region36: #{map_loss_swag.1} parent=31 // pred_fallthru
        _
      %v214 = vld [vmem:[%s197] sm:$0xff]
      %v215 = vld [vmem:[%s203] sm:$0xff]
      %v216 = vsub.f32 %v214, %v215
      %v217 = vmul.f32 %v216, %v216
      %v218 = vld [vmem:[#allocation2] sm:$0xff]
      %v219 = vadd.f32 %v217, 0.0
      %v220 = vadd.f32 %v218, %v219
      %221 = vst [vmem:[#allocation2] sm:$0xff] %v220
      // Predicated region
      $region37: #{map_loss_swag.1} parent=31 // pred_check
        %p222 = pneg %p209
      $region38: #{map_loss_swag.1} parent=31 // pred_check_branch
        %224 = sbr.rel (%p222) target = $region40
      $region39: #{map_loss_swag.1} parent=31 // pred_region
        %v225 = vld [vmem:[%s2] sm:$0xff]
        %v226 = vmul.f32 %v225, %v225
        %227 = vadd.xlane.f32.xlu0 %v226
        %v228 = vpop.xlane.xlu0 %227
        %v229 = vrot.slane %v228, 4
        %v230 = vadd.f32 %v228, %v229
        %v231 = vrot.slane %v230, 2
        %v232 = vadd.f32 %v230, %v231
        %v233 = vrot.slane %v232, 1
        %v234 = vadd.f32 %v232, %v233
        %s235 = vtos %v234
        %s236 = smul.f32 %s235, -0.5
        %s237 = ssub.f32 %s236, 499.90256
        %s238 = smul.f32 %s237, 0.0018382353
        %v239 = vld [vmem:[#allocation2] sm:$0xff]
        %v240 = vmul.f32 %v239, 0.00048828125
        %s241 = smul.f32 %s238, 0.00048828125
        %v242 = vstv %s241
        %v243 = vsub.f32 %v240, %v242
        %244 = vst [vmem:[%s208] sm:$0xff] %v243
      $region40: #{map_loss_swag.1} parent=31 // pred_fallthru
        _
      %p245 = scmp.lt.s32.totalorder %s18, 1
      %s246 = scalar_select %p245, %s18, 1
      %s247 = smul.addr %s246, 8
      %s248 = scalar_lea.vmem %s3, %s247
      // Predicated region
      $region41: #{map_loss_swag.1} parent=31 // pred_check
        %p249 = pneg %p121
      $region42: #{map_loss_swag.1} parent=31 // pred_check_branch
        %251 = sbr.rel (%p249) target = $region44
      $region43: #{map_loss_swag.1} parent=31 // pred_region
        _
      $region44: #{map_loss_swag.1} parent=31 // pred_fallthru
        _
    $region32: #{map_loss_swag.1} parent=5 // pred_fallthru
      _
    %p252 = scmp.le.s32.totalorder 2, %s9
    // Predicated region
    $region45: #{map_loss_swag.1} parent=5 // pred_check
      %p253 = pneg %p252
    $region46: #{map_loss_swag.1} parent=5 // pred_check_branch
      %255 = sbr.rel (%p253) target = $region48
    $region47: #{map_loss_swag.1} parent=5 // pred_region
      %s256 = ssub.s32 %s9, 2
      // Predicated region
      $region49: #{map_loss_swag.1} parent=47 // pred_check
        %p257 = pneg %p127
      $region50: #{map_loss_swag.1} parent=47 // pred_check_branch
        %259 = sbr.rel (%p257) target = $region52
      $region51: #{map_loss_swag.1} parent=47 // pred_region
        %p260 = scmp.lt.s32.totalorder %s20, 1
        %s261 = scalar_select %p260, %s20, 1
        %s262 = smul.addr %s261, 8
        %s263 = scalar_lea.vmem %s3, %s262
      $region52: #{map_loss_swag.1} parent=47 // pred_fallthru
        _
    $region48: #{map_loss_swag.1} parent=5 // pred_fallthru
      _
  $region6: #{map_loss_swag.1} parent=0 // loop_footer
    %s13 = sadd.s32 1, %s9
  $region7: #{map_loss_swag.1} parent=0 // loop_footer_branch
    %8 = sbr.rel target = $region3
  $region8: #{map_loss_swag.1} parent=0 // loop_exit
    _

</llo_original>
